<compile_context>
chip_gen: v7x
topology: tpu7x:2x2x1
jax: 0.10.0
libtpu: 0.0.40
codegen_flags: <defaults>
</compile_context>

<pallas_src>
import jax
import jax.numpy as jnp
from jax.experimental import pallas as pl
from jax.experimental.pallas import tpu as pltpu

NEG_SLOPE = 0.01  # torch.nn.LeakyReLU default negative_slope
BN_EPS = 1e-3     # scvi FCLayers uses BatchNorm1d(..., eps=0.001)


def _round_up(x, m):
    return ((x + m - 1) // m) * m


def _leaky_relu(x):
    return jnp.where(x >= 0, x, NEG_SLOPE * x)


# ----------------------------------------------------------------------------
# Kernels
# ----------------------------------------------------------------------------

def hidden_kernel(z_ref, w1_ref, b1_ref, w2_ref, b2_ref, h_ref):
    """Two small Linear(+folded BN)+LeakyReLU layers for one batch tile."""
    h = jnp.dot(z_ref[...], w1_ref[...],
                preferred_element_type=jnp.float32) + b1_ref[...]
    h = _leaky_relu(h)
    h = jnp.dot(h, w2_ref[...],
                preferred_element_type=jnp.float32) + b2_ref[...]
    h_ref[...] = _leaky_relu(h).astype(h_ref.dtype)


def output_kernel(h_ref, w3_ref, b3_ref, out_ref):
    """sigmoid(h @ W3 + b3) for one (n_output_tile, batch_tile) grid step.

    W3/b3 depend only on the OUTER grid index, so they stay VMEM-resident
    across the whole inner batch loop (fetched from HBM exactly once).
    """
    logits = jnp.dot(h_ref[...], w3_ref[...],
                     preferred_element_type=jnp.float32) + b3_ref[...]
    out_ref[...] = jax.nn.sigmoid(logits).astype(out_ref.dtype)


# ----------------------------------------------------------------------------
# Parameter preparation (one-time: BN fold, W3 pad + cast)
# ----------------------------------------------------------------------------

def _fold_bn(w, b, gamma, beta, rmean, rvar):
    """Fold eval-mode BatchNorm1d into the preceding Linear layer."""
    s = gamma / jnp.sqrt(rvar + BN_EPS)
    return w * s[None, :], b * s + (beta - rmean * s)


def prepare_params(params, *, w3_dtype=jnp.bfloat16):
    """Fold BN, pre-pad n_output to a 128 multiple and pre-cast W3 once."""
    (w1, b1, g1, be1, rm1, rv1,
     w2, b2, g2, be2, rm2, rv2,
     w3, b3) = params

    # TODO(synk): training-mode BatchNorm (batch statistics) not implemented; eval-mode only.
    w1f, b1f = _fold_bn(w1, b1, g1, be1, rm1, rv1)
    w2f, b2f = _fold_bn(w2, b2, g2, be2, rm2, rv2)

    n_output = w3.shape[1]
    n_pad = _round_up(n_output, 128)
    if n_pad != n_output:
        w3 = jnp.pad(w3, ((0, 0), (0, n_pad - n_output)))
        b3 = jnp.pad(b3, ((0, n_pad - n_output),))

    return {
        "w1": w1f, "b1": b1f.reshape(1, -1),
        "w2": w2f, "b2": b2f.reshape(1, -1),
        "w3": w3.astype(w3_dtype),         # streamed operand (bf16 by default)
        "b3": b3.reshape(1, -1).astype(jnp.float32),
        "n_output": n_output,
        "w3_dtype": w3_dtype,
    }


# ----------------------------------------------------------------------------
# Forward
# ----------------------------------------------------------------------------

def _vmem_budget():
    """~75% of physical VMEM (64 MiB on v7x, 128 MiB on v5e/v6e)."""
    try:
        cap = int(pltpu.get_tpu_info().vmem_capacity_bytes)
    except Exception:
        cap = 64 << 20  # conservative (v7x)
    return (cap * 3) // 4


def _est_output_vmem(tm, tn, n_hidden, h_bytes, w3_bytes, out_bytes):
    # double-buffered h + W3 + b3 tiles and output tile
    return 2 * (tm * n_hidden * h_bytes
                + n_hidden * tn * w3_bytes
                + tn * 4
                + tm * tn * out_bytes)


def decoder_peakvi_forward(z, prep, *, out_dtype=jnp.float32,
                           tm_cap=256, tn_cap=8192, slice_output=True):
    """DecoderPeakVI forward (eval mode) via two tiled pallas_calls."""
    w1, b1 = prep["w1"], prep["b1"]
    w2, b2 = prep["w2"], prep["b2"]
    w3, b3 = prep["w3"], prep["b3"]
    n_output = prep["n_output"]
    w3_dtype = prep["w3_dtype"]

    B, n_in = z.shape
    n_hidden = w1.shape[1]
    N_pad = w3.shape[1]                     # already a multiple of 128

    h_bytes = jnp.dtype(w3_dtype).itemsize
    w3_bytes = jnp.dtype(w3_dtype).itemsize
    out_bytes = jnp.dtype(out_dtype).itemsize
    budget = _vmem_budget()

    # Batch tile TM (sublane multiple of 8).
    TM = min(_round_up(B, 8), max(8, _round_up(tm_cap, 8)))
    B_pad = _round_up(B, TM)

    # Output tile TN: lane-dense multiple of 128 that divides N_pad (so padding
    # never exceeds one 128-wide tail), as large as the VMEM budget allows.
    n128 = N_pad // 128
    cap128 = max(1, min(n128, _round_up(tn_cap, 128) // 128))
    tn = 128
    for d in range(1, n128 + 1):
        if n128 % d != 0 or d > cap128:
            continue
        cand = d * 128
        if _est_output_vmem(TM, cand, n_hidden, h_bytes, w3_bytes, out_bytes) <= budget:
            tn = max(tn, cand)
    TN = tn

    est = _est_output_vmem(TM, TN, n_hidden, h_bytes, w3_bytes, out_bytes)
    vmem_limit = int(min(budget, max(32 << 20, est + (4 << 20))))

    z_p = z if B_pad == B else jnp.pad(z, ((0, B_pad - B), (0, 0)))

    # --- Stage 1: hidden layers (tiny, batch-tiled only) -------------------
    h = pl.pallas_call(
        hidden_kernel,
        out_shape=jax.ShapeDtypeStruct((B_pad, n_hidden), w3_dtype),
        grid_spec=pltpu.PrefetchScalarGridSpec(
            num_scalar_prefetch=0,
            grid=(B_pad // TM,),
            in_specs=[
                pl.BlockSpec((TM, n_in), lambda i: (i, 0)),            # z tile
                pl.BlockSpec((n_in, n_hidden), lambda i: (0, 0)),      # W1 (BN folded)
                pl.BlockSpec((1, n_hidden), lambda i: (0, 0)),         # b1
                pl.BlockSpec((n_hidden, n_hidden), lambda i: (0, 0)),  # W2 (BN folded)
                pl.BlockSpec((1, n_hidden), lambda i: (0, 0)),         # b2
            ],
            out_specs=pl.BlockSpec((TM, n_hidden), lambda i: (i, 0)),
        ),
        compiler_params=pltpu.CompilerParams(
            dimension_semantics=("parallel",),
        ),
    )(z_p, w1, b1, w2, b2)

    # --- Stage 2: output head, W3-stream bound ------------------------------
    # Grid = (n_output tiles OUTER, batch tiles INNER): each W3/b3 tile is
    # fetched once and reused across all batch tiles.
    grid = (N_pad // TN, B_pad // TM)

    out = pl.pallas_call(
        output_kernel,
        out_shape=jax.ShapeDtypeStruct((B_pad, N_pad), out_dtype),
        grid_spec=pltpu.PrefetchScalarGridSpec(
            num_scalar_prefetch=0,
            grid=grid,
            in_specs=[
                pl.BlockSpec((TM, n_hidden), lambda j, i: (i, 0)),  # h tile
                pl.BlockSpec((n_hidden, TN), lambda j, i: (0, j)),  # W3 tile (resident over i)
                pl.BlockSpec((1, TN), lambda j, i: (0, j)),         # b3 tile
            ],
            out_specs=pl.BlockSpec((TM, TN), lambda j, i: (i, j)),
        ),
        compiler_params=pltpu.CompilerParams(
            dimension_semantics=("parallel", "parallel"),
            vmem_limit_bytes=vmem_limit,
        ),
    )(h, w3, b3)

    if not slice_output:
        return out          # consumer must ignore rows >= B / cols >= n_output
    if B_pad == B and N_pad == n_output:
        return out
    return out[:B, :n_output]


# ----------------------------------------------------------------------------
# Synthetic parameters + pure-JAX reference
# ----------------------------------------------------------------------------

def init_params(key, n_input, n_hidden, n_output):
    """Deterministic synthetic parameters matching the torch module's shapes."""
    ks = jax.random.split(key, 6)

    def linear(kw, kb, fan_in, fan_out):
        lim = 1.0 / jnp.sqrt(fan_in)
        w = jax.random.uniform(kw, (fan_in, fan_out), jnp.float32, -lim, lim)
        b = jax.random.uniform(kb, (fan_out,), jnp.float32, -lim, lim)
        return w, b

    w1, b1 = linear(ks[0], ks[1], n_input, n_hidden)
    w2, b2 = linear(ks[2], ks[3], n_hidden, n_hidden)
    w3, b3 = linear(ks[4], ks[5], n_hidden, n_output)

    # BatchNorm affine + running stats — non-trivial but deterministic so the
    # fold is actually exercised.
    g1 = 1.0 + 0.05 * jnp.arange(n_hidden, dtype=jnp.float32) / n_hidden
    be1 = 0.01 * jnp.arange(n_hidden, dtype=jnp.float32) / n_hidden
    rm1 = 0.1 * jnp.sin(jnp.arange(n_hidden, dtype=jnp.float32))
    rv1 = 1.0 + 0.1 * jnp.cos(jnp.arange(n_hidden, dtype=jnp.float32)) ** 2

    g2 = 1.0 - 0.03 * jnp.arange(n_hidden, dtype=jnp.float32) / n_hidden
    be2 = -0.02 * jnp.arange(n_hidden, dtype=jnp.float32) / n_hidden
    rm2 = 0.05 * jnp.cos(jnp.arange(n_hidden, dtype=jnp.float32))
    rv2 = 1.0 + 0.2 * jnp.sin(jnp.arange(n_hidden, dtype=jnp.float32)) ** 2

    return (w1, b1, g1, be1, rm1, rv1,
            w2, b2, g2, be2, rm2, rv2,
            w3, b3)


def reference_forward(z, params):
    """Pure-JAX reference of the same forward pass (for a sanity check)."""
    (w1, b1, g1, be1, rm1, rv1,
     w2, b2, g2, be2, rm2, rv2,
     w3, b3) = params
    h = z @ w1 + b1
    h = (h - rm1) / jnp.sqrt(rv1 + BN_EPS) * g1 + be1
    h = jnp.where(h >= 0, h, NEG_SLOPE * h)
    h = h @ w2 + b2
    h = (h - rm2) / jnp.sqrt(rv2 + BN_EPS) * g2 + be2
    h = jnp.where(h >= 0, h, NEG_SLOPE * h)
    return jax.nn.sigmoid(h @ w3 + b3)


if __name__ == "__main__":
    # Small shapes consistent with DecoderPeakVI(n_input, n_output, n_hidden=...).
    # n_output=300 / batch=40 are deliberately not tile multiples so padding and
    # the (n_output, batch) grid are exercised (tm_cap/tn_cap shrunk to force a
    # 3x3 grid at toy scale).
    batch, n_input, n_hidden, n_output = 40, 16, 32, 300

    key = jax.random.PRNGKey(0)
    kz, kp = jax.random.split(key)
    z = jax.random.normal(kz, (batch, n_input), jnp.float32)
    params = init_params(kp, n_input, n_hidden, n_output)

    ref = reference_forward(z, params)

    # f32 W3 path — matches the PyTorch module's numerics.
    prep_f32 = prepare_params(params, w3_dtype=jnp.float32)
    out = decoder_peakvi_forward(z, prep_f32, tm_cap=16, tn_cap=128)
    out = jax.block_until_ready(out)
    assert out.shape == (batch, n_output)
    assert jnp.allclose(out, ref, atol=1e-5, rtol=1e-5), "f32 mismatch vs reference"

    # Default bf16-streamed W3 path — halves the dominant HBM stream; f32 MXU
    # accumulation keeps sigmoid outputs close (~1e-2 worst case).
    prep_bf16 = prepare_params(params)
    out_bf16 = decoder_peakvi_forward(z, prep_bf16, tm_cap=16, tn_cap=128)
    out_bf16 = jax.block_until_ready(out_bf16)
    assert out_bf16.shape == (batch, n_output)
    assert float(jnp.max(jnp.abs(out_bf16 - ref))) < 3e-2, "bf16 path diverged"

    # Large-tile defaults (single-tile grid) + bf16 output writeback option.
    out_big = decoder_peakvi_forward(z, prep_bf16, out_dtype=jnp.bfloat16)
    out_big = jax.block_until_ready(out_big)
    assert out_big.shape == (batch, n_output)
    assert float(jnp.max(jnp.abs(out_big.astype(jnp.float32) - ref))) < 3e-2

    print("KERNEL_OK")
</pallas_src>

<mosaic_0001>
module attributes {stable_mosaic.version = 11 : i64} {
  func.func @hidden_kernel(%arg0: i32, %arg1: memref<16x16xf32, #tpu.memory_space<vmem>>, %arg2: memref<16x32xf32, #tpu.memory_space<vmem>>, %arg3: memref<1x32xf32, #tpu.memory_space<vmem>>, %arg4: memref<32x32xf32, #tpu.memory_space<vmem>>, %arg5: memref<1x32xf32, #tpu.memory_space<vmem>>, %arg6: memref<16x32xf32, #tpu.memory_space<vmem>>) attributes {dimension_semantics = [#tpu.dimension_semantics<parallel>], iteration_bounds = array<i64: 3>, scalar_prefetch = 0 : i64, scratch_operands = 0 : i64, tpu.core_type = #tpu.core_type<tc>, window_params = [{transform_indices = @transform_0, window_bounds = array<i64: 16, 16>}, {pipeline_mode = #tpu.pipeline_mode<synchronous>, transform_indices = @transform_1, window_bounds = array<i64: 16, 32>}, {pipeline_mode = #tpu.pipeline_mode<synchronous>, transform_indices = @transform_2, window_bounds = array<i64: 1, 32>}, {pipeline_mode = #tpu.pipeline_mode<synchronous>, transform_indices = @transform_3, window_bounds = array<i64: 32, 32>}, {pipeline_mode = #tpu.pipeline_mode<synchronous>, transform_indices = @transform_4, window_bounds = array<i64: 1, 32>}, {transform_indices = @transform_5, window_bounds = array<i64: 16, 32>}]} {
    %c0 = arith.constant 0 : index
    %c0_0 = arith.constant 0 : index
    %0 = vector.load %arg1[%c0, %c0_0] : memref<16x16xf32, #tpu.memory_space<vmem>>, vector<16x16xf32>
    %c0_1 = arith.constant 0 : index
    %c0_2 = arith.constant 0 : index
    %1 = vector.load %arg2[%c0_1, %c0_2] : memref<16x32xf32, #tpu.memory_space<vmem>>, vector<16x32xf32>
    %cst = arith.constant dense<0.000000e+00> : vector<16x32xf32>
    %2 = tpu.matmul %0, %1, %cst {dimension_numbers = #tpu.dot_dimension_numbers<[1], [0], [0], [1], [0, 0, 1, 1], [], []>} : vector<16x16xf32>, vector<16x32xf32>, vector<16x32xf32> -> vector<16x32xf32>
    %c0_3 = arith.constant 0 : index
    %c0_4 = arith.constant 0 : index
    %3 = vector.load %arg3[%c0_3, %c0_4] : memref<1x32xf32, #tpu.memory_space<vmem>>, vector<1x32xf32>
    %4 = vector.broadcast %3 : vector<1x32xf32> to vector<16x32xf32>
    %5 = arith.addf %2, %4 : vector<16x32xf32>
    %cst_5 = arith.constant 0.000000e+00 : f32
    %6 = vector.broadcast %cst_5 : f32 to vector<16x32xf32>
    %7 = arith.cmpf oge, %5, %6 : vector<16x32xf32>
    %cst_6 = arith.constant 0.00999999977 : f32
    %8 = vector.broadcast %cst_6 : f32 to vector<16x32xf32>
    %9 = arith.mulf %8, %5 : vector<16x32xf32>
    %10 = arith.select %7, %5, %9 : vector<16x32xi1>, vector<16x32xf32>
    %c0_7 = arith.constant 0 : index
    %c0_8 = arith.constant 0 : index
    %11 = vector.load %arg4[%c0_7, %c0_8] : memref<32x32xf32, #tpu.memory_space<vmem>>, vector<32x32xf32>
    %cst_9 = arith.constant dense<0.000000e+00> : vector<16x32xf32>
    %12 = tpu.matmul %10, %11, %cst_9 {dimension_numbers = #tpu.dot_dimension_numbers<[1], [0], [0], [1], [0, 0, 1, 1], [], []>} : vector<16x32xf32>, vector<32x32xf32>, vector<16x32xf32> -> vector<16x32xf32>
    %c0_10 = arith.constant 0 : index
    %c0_11 = arith.constant 0 : index
    %13 = vector.load %arg5[%c0_10, %c0_11] : memref<1x32xf32, #tpu.memory_space<vmem>>, vector<1x32xf32>
    %14 = vector.broadcast %13 : vector<1x32xf32> to vector<16x32xf32>
    %15 = arith.addf %12, %14 : vector<16x32xf32>
    %cst_12 = arith.constant 0.000000e+00 : f32
    %16 = vector.broadcast %cst_12 : f32 to vector<16x32xf32>
    %17 = arith.cmpf oge, %15, %16 : vector<16x32xf32>
    %cst_13 = arith.constant 0.00999999977 : f32
    %18 = vector.broadcast %cst_13 : f32 to vector<16x32xf32>
    %19 = arith.mulf %18, %15 : vector<16x32xf32>
    %20 = arith.select %17, %15, %19 : vector<16x32xi1>, vector<16x32xf32>
    %c0_14 = arith.constant 0 : index
    %c0_15 = arith.constant 0 : index
    %21 = vector.load %arg6[%c0_14, %c0_15] : memref<16x32xf32, #tpu.memory_space<vmem>>, vector<16x32xf32>
    tpu.vector_store %arg6[%c0_14, %c0_15], %20 {strides = array<i32>} : memref<16x32xf32, #tpu.memory_space<vmem>>, vector<16x32xf32>,
    return
  }
  func.func @transform_0(%arg0: i32) -> (i32, i32) {
    %c0_i32 = arith.constant 0 : i32
    %c0_i32_0 = arith.constant 0 : i32
    return %arg0, %c0_i32 : i32, i32
  }
  func.func @transform_1(%arg0: i32) -> (i32, i32) {
    %c0_i32 = arith.constant 0 : i32
    %c0_i32_0 = arith.constant 0 : i32
    %c0_i32_1 = arith.constant 0 : i32
    return %c0_i32, %c0_i32_0 : i32, i32
  }
  func.func @transform_2(%arg0: i32) -> (i32, i32) {
    %c0_i32 = arith.constant 0 : i32
    %c0_i32_0 = arith.constant 0 : i32
    %c0_i32_1 = arith.constant 0 : i32
    return %c0_i32, %c0_i32_0 : i32, i32
  }
  func.func @transform_3(%arg0: i32) -> (i32, i32) {
    %c0_i32 = arith.constant 0 : i32
    %c0_i32_0 = arith.constant 0 : i32
    %c0_i32_1 = arith.constant 0 : i32
    return %c0_i32, %c0_i32_0 : i32, i32
  }
  func.func @transform_4(%arg0: i32) -> (i32, i32) {
    %c0_i32 = arith.constant 0 : i32
    %c0_i32_0 = arith.constant 0 : i32
    %c0_i32_1 = arith.constant 0 : i32
    return %c0_i32, %c0_i32_0 : i32, i32
  }
  func.func @transform_5(%arg0: i32) -> (i32, i32) {
    %c0_i32 = arith.constant 0 : i32
    %c0_i32_0 = arith.constant 0 : i32
    return %arg0, %c0_i32 : i32, i32
  }
}

</mosaic_0001>

<llo_original>
// kernel: tpu_custom_call.1
$region0: #{tpu_custom_call.1}
  #allocation0 [shape = 'u32[]', space=smem, size = 0x4, offset = 0x4, fixed_abs, tag = 'smem constant byte address 0x4 - core index']
  #allocation1 [shape = 'u32[144,128]{1,0:T(1,128)}', space=vmem, size = 0x12000, scoped, tag = 'internal scratch']
  %s0 = inlined_call_operand.vmem [shape: f32[48,16], index: 0, kind: input, shape index: {}]
  %s1 = inlined_call_operand.vmem [shape: f32[16,32], index: 1, kind: input, shape index: {}]
  %s2 = inlined_call_operand.vmem [shape: f32[1,32], index: 2, kind: input, shape index: {}]
  %s3 = inlined_call_operand.vmem [shape: f32[32,32], index: 3, kind: input, shape index: {}]
  %s4 = inlined_call_operand.vmem [shape: f32[1,32], index: 4, kind: input, shape index: {}]
  %s5 = inlined_call_operand.vmem [shape: f32[48,32], index: 5, kind: output, shape index: {}]
  %s6 = sld [smem:[#allocation0]]
  $region53: #{tpu_custom_call.1} parent=0
    _
  %s8 = ssub.s32 1, %s6
  %s9 = scalar_select 0, %s8, %s6
  loop: start=0, step=1, limit=5
  $region2: #{tpu_custom_call.1} parent=0 // loop_pre_header
    _
  $region3: #{tpu_custom_call.1} parent=0 // loop_header
    %s11 = sphi 0, %s15
    %p12 = scmp.ge.s32.totalorder %s11, 5
    %s21 = sphi 0, %s23
    %s24 = sphi 0, %s21
    %s25 = sphi 0, %s24
    %s41 = sphi 0, %s25
    %s45 = sphi 0, %s45
    %s47 = sphi 0, %s45
    %s48 = sphi 0, %s47
    %s62 = sphi 0, %s48
    %s66 = sphi 0, %s66
    %s68 = sphi 0, %s66
    %s69 = sphi 0, %s68
    %s83 = sphi 0, %s69
    %s87 = sphi 0, %s87
    %s89 = sphi 0, %s87
    %s90 = sphi 0, %s89
    %s104 = sphi 0, %s90
    %s108 = sphi 0, %s108
    %s110 = sphi 0, %s108
    %s111 = sphi 0, %s110
    %s125 = sphi 0, %s111
    %s131 = sphi 0, %s133
    %s134 = sphi 0, %s131
    %s135 = sphi 0, %s134
    %s151 = sphi 0, %s135
  $region4: #{tpu_custom_call.1} parent=0 // loop_header_branch
    %14 = sbr.rel (%p12) target = $region8
  $region5: #{tpu_custom_call.1} parent=0 // loop_body
    %s16 = ssub.s32 %s11, 1
    %s17 = ssub.s32 %s11, 2
    %s18 = sadd.s32 %s11, 1
    %s19 = ssub.s32 %s11, %s18
    %p20 = scmp.eq.s32.totalorder %s19, 0
    %s22 = sadd.s32 %s21, 1
    %s23 = scalar_select %p20, %s21, %s22
    %p26 = pneg %p20
    %p27 = scmp.eq.s32.totalorder %s11, 2
    %p28 = por %p26, %p27
    %p29 = scmp.ne.s32.totalorder %s21, %s24
    %p30 = scmp.eq.s32.totalorder %s11, 0
    %p31 = por %p29, %p30
    %p32 = scmp.ne.s32.totalorder %s21, %s24
    %p33 = scmp.eq.s32.totalorder %s16, 2
    %p34 = por %p32, %p33
    %p35 = scmp.ne.s32.totalorder %s24, %s25
    %p36 = scmp.eq.s32.totalorder %s16, 0
    %p37 = por %p35, %p36
    %p38 = scmp.ne.s32.totalorder %s24, %s25
    %p39 = scmp.eq.s32.totalorder %s17, 2
    %p40 = por %p38, %p39
    %p42 = scmp.ne.s32.totalorder %s25, %s41
    %p43 = scmp.eq.s32.totalorder %s17, 0
    %p44 = por %p42, %p43
    %s46 = sadd.s32 %s45, 1
    %p49 = scmp.eq.s32.totalorder %s11, 2
    %p50 = scmp.ne.s32.totalorder %s45, %s47
    %p51 = scmp.eq.s32.totalorder %s11, 0
    %p52 = por %p50, %p51
    %p53 = scmp.ne.s32.totalorder %s45, %s47
    %p54 = scmp.eq.s32.totalorder %s16, 2
    %p55 = por %p53, %p54
    %p56 = scmp.ne.s32.totalorder %s47, %s48
    %p57 = scmp.eq.s32.totalorder %s16, 0
    %p58 = por %p56, %p57
    %p59 = scmp.ne.s32.totalorder %s47, %s48
    %p60 = scmp.eq.s32.totalorder %s17, 2
    %p61 = por %p59, %p60
    %p63 = scmp.ne.s32.totalorder %s48, %s62
    %p64 = scmp.eq.s32.totalorder %s17, 0
    %p65 = por %p63, %p64
    %s67 = sadd.s32 %s66, 1
    %p70 = scmp.eq.s32.totalorder %s11, 2
    %p71 = scmp.ne.s32.totalorder %s66, %s68
    %p72 = scmp.eq.s32.totalorder %s11, 0
    %p73 = por %p71, %p72
    %p74 = scmp.ne.s32.totalorder %s66, %s68
    %p75 = scmp.eq.s32.totalorder %s16, 2
    %p76 = por %p74, %p75
    %p77 = scmp.ne.s32.totalorder %s68, %s69
    %p78 = scmp.eq.s32.totalorder %s16, 0
    %p79 = por %p77, %p78
    %p80 = scmp.ne.s32.totalorder %s68, %s69
    %p81 = scmp.eq.s32.totalorder %s17, 2
    %p82 = por %p80, %p81
    %p84 = scmp.ne.s32.totalorder %s69, %s83
    %p85 = scmp.eq.s32.totalorder %s17, 0
    %p86 = por %p84, %p85
    %s88 = sadd.s32 %s87, 1
    %p91 = scmp.eq.s32.totalorder %s11, 2
    %p92 = scmp.ne.s32.totalorder %s87, %s89
    %p93 = scmp.eq.s32.totalorder %s11, 0
    %p94 = por %p92, %p93
    %p95 = scmp.ne.s32.totalorder %s87, %s89
    %p96 = scmp.eq.s32.totalorder %s16, 2
    %p97 = por %p95, %p96
    %p98 = scmp.ne.s32.totalorder %s89, %s90
    %p99 = scmp.eq.s32.totalorder %s16, 0
    %p100 = por %p98, %p99
    %p101 = scmp.ne.s32.totalorder %s89, %s90
    %p102 = scmp.eq.s32.totalorder %s17, 2
    %p103 = por %p101, %p102
    %p105 = scmp.ne.s32.totalorder %s90, %s104
    %p106 = scmp.eq.s32.totalorder %s17, 0
    %p107 = por %p105, %p106
    %s109 = sadd.s32 %s108, 1
    %p112 = scmp.eq.s32.totalorder %s11, 2
    %p113 = scmp.ne.s32.totalorder %s108, %s110
    %p114 = scmp.eq.s32.totalorder %s11, 0
    %p115 = por %p113, %p114
    %p116 = scmp.ne.s32.totalorder %s108, %s110
    %p117 = scmp.eq.s32.totalorder %s16, 2
    %p118 = por %p116, %p117
    %p119 = scmp.ne.s32.totalorder %s110, %s111
    %p120 = scmp.eq.s32.totalorder %s16, 0
    %p121 = por %p119, %p120
    %p122 = scmp.ne.s32.totalorder %s110, %s111
    %p123 = scmp.eq.s32.totalorder %s17, 2
    %p124 = por %p122, %p123
    %p126 = scmp.ne.s32.totalorder %s111, %s125
    %p127 = scmp.eq.s32.totalorder %s17, 0
    %p128 = por %p126, %p127
    %s129 = ssub.s32 %s11, %s18
    %p130 = scmp.eq.s32.totalorder %s129, 0
    %s132 = sadd.s32 %s131, 1
    %s133 = scalar_select %p130, %s131, %s132
    %p136 = pneg %p130
    %p137 = scmp.eq.s32.totalorder %s11, 2
    %p138 = por %p136, %p137
    %p139 = scmp.ne.s32.totalorder %s131, %s134
    %p140 = scmp.eq.s32.totalorder %s11, 0
    %p141 = por %p139, %p140
    %p142 = scmp.ne.s32.totalorder %s131, %s134
    %p143 = scmp.eq.s32.totalorder %s16, 2
    %p144 = por %p142, %p143
    %p145 = scmp.ne.s32.totalorder %s134, %s135
    %p146 = scmp.eq.s32.totalorder %s16, 0
    %p147 = por %p145, %p146
    %p148 = scmp.ne.s32.totalorder %s134, %s135
    %p149 = scmp.eq.s32.totalorder %s17, 2
    %p150 = por %p148, %p149
    %p152 = scmp.ne.s32.totalorder %s135, %s151
    %p153 = scmp.eq.s32.totalorder %s17, 0
    %p154 = por %p152, %p153
    %p155 = scmp.le.s32.totalorder 1, %s11
    %p156 = scmp.lt.s32.totalorder %s11, 4
    %p157 = pnand %p155, %p156
    %p158 = pneg %p157
    // Predicated region
    $region9: #{tpu_custom_call.1} parent=5 // pred_check
      _
    $region10: #{tpu_custom_call.1} parent=5 // pred_check_branch
      %160 = sbr.rel (%p157) target = $region12
    $region11: #{tpu_custom_call.1} parent=5 // pred_region
      %s161 = ssub.s32 %s11, 1
      // Predicated region
      $region13: #{tpu_custom_call.1} parent=11 // pred_check
        %p162 = pneg %p58
      $region14: #{tpu_custom_call.1} parent=11 // pred_check_branch
        %164 = sbr.rel (%p162) target = $region16
      $region15: #{tpu_custom_call.1} parent=11 // pred_region
        _
      $region16: #{tpu_custom_call.1} parent=11 // pred_fallthru
        _
      // Predicated region
      $region17: #{tpu_custom_call.1} parent=11 // pred_check
        %p165 = pneg %p79
      $region18: #{tpu_custom_call.1} parent=11 // pred_check_branch
        %167 = sbr.rel (%p165) target = $region20
      $region19: #{tpu_custom_call.1} parent=11 // pred_region
        _
      $region20: #{tpu_custom_call.1} parent=11 // pred_fallthru
        _
      // Predicated region
      $region21: #{tpu_custom_call.1} parent=11 // pred_check
        %p168 = pneg %p100
      $region22: #{tpu_custom_call.1} parent=11 // pred_check_branch
        %170 = sbr.rel (%p168) target = $region24
      $region23: #{tpu_custom_call.1} parent=11 // pred_region
        _
      $region24: #{tpu_custom_call.1} parent=11 // pred_fallthru
        _
      // Predicated region
      $region25: #{tpu_custom_call.1} parent=11 // pred_check
        %p171 = pneg %p121
      $region26: #{tpu_custom_call.1} parent=11 // pred_check_branch
        %173 = sbr.rel (%p171) target = $region28
      $region27: #{tpu_custom_call.1} parent=11 // pred_region
        _
      $region28: #{tpu_custom_call.1} parent=11 // pred_fallthru
        _
    $region12: #{tpu_custom_call.1} parent=5 // pred_fallthru
      _
    %p174 = scmp.lt.s32.totalorder %s11, 3
    // Predicated region
    $region29: #{tpu_custom_call.1} parent=5 // pred_check
      %p175 = pneg %p174
    $region30: #{tpu_custom_call.1} parent=5 // pred_check_branch
      %177 = sbr.rel (%p175) target = $region32
    $region31: #{tpu_custom_call.1} parent=5 // pred_region
      // Predicated region
      $region33: #{tpu_custom_call.1} parent=31 // pred_check
        %p178 = pneg %p31
      $region34: #{tpu_custom_call.1} parent=31 // pred_check_branch
        %180 = sbr.rel (%p178) target = $region36
      $region35: #{tpu_custom_call.1} parent=31 // pred_region
        %s181 = smul.u32 2, %s11
        %p182 = scmp.lt.s32.totalorder %s181, 5
        %s183 = scalar_select %p182, %s181, 5
        %s184 = smul.addr %s183, 8
        %s185 = scalar_lea.vmem %s0, %s184
        %s186 = smul.u32 2, %s11
      $region36: #{tpu_custom_call.1} parent=31 // pred_fallthru
        _
    $region32: #{tpu_custom_call.1} parent=5 // pred_fallthru
      _
    %p187 = scmp.le.s32.totalorder 1, %s11
    %p188 = scmp.lt.s32.totalorder %s11, 4
    %p189 = pnand %p187, %p188
    %p190 = pneg %p189
    // Predicated region
    $region37: #{tpu_custom_call.1} parent=5 // pred_check
      _
    $region38: #{tpu_custom_call.1} parent=5 // pred_check_branch
      %192 = sbr.rel (%p189) target = $region40
    $region39: #{tpu_custom_call.1} parent=5 // pred_region
      %s193 = ssub.s32 %s11, 1
      %s194 = smul.u32 2, %s16
      %p195 = scmp.lt.s32.totalorder %s194, 5
      %s196 = scalar_select %p195, %s194, 5
      %s197 = smul.addr %s196, 8
      %s198 = scalar_lea.vmem %s0, %s197
      %p199 = pneg %p37
      %p200 = pneg %p34
      %p201 = pneg %p58
      %p202 = pneg %p55
      %p203 = pneg %p79
      %p204 = pneg %p76
      %p205 = pneg %p100
      %p206 = pneg %p97
      %p207 = pneg %p121
      %p208 = pneg %p118
      %p209 = pneg %p147
      %p210 = pneg %p144
      %s211 = smul.u32 2, %s16
      %p212 = scmp.lt.s32.totalorder %s211, 5
      %s213 = scalar_select %p212, %s211, 5
      %s214 = smul.addr %s213, 8
      %s215 = scalar_lea.vmem %s5, %s214
      %s216 = smul.u32 2, %s16
      %p217 = scmp.lt.s32.totalorder %s216, 5
      %s218 = scalar_select %p217, %s216, 5
      %s219 = smul.addr %s218, 8
      %s220 = scalar_lea.vmem %s0, %s219
      %s221 = smul.u32 2, %s16
      %s222 = smul.u32 2, %s16
      %p223 = scmp.lt.s32.totalorder %s222, 5
      %s224 = scalar_select %p223, %s222, 5
      %s225 = smul.addr %s224, 8
      %s226 = scalar_lea.vmem %s5, %s225
      %s227 = smul.u32 2, %s16
      %v228 = vld [vmem:[%s220] sm:$0xff]
      %v229 = vld [vmem:[%s220 + $0x8] sm:$0xff]
      %v230 = vld [vmem:[%s1] sm:$0xff]
      %v231 = vld [vmem:[%s1 + $0x8] sm:$0xff]
      %v232 = vld [vmem:[%s2] sm:$0x1]
      %v234 = vlaneseq
      %v235 = vshrl.u32 %v234, 7
      %v236 = vsub.s32 0, %v235
      %v237 = vrot.slane %v232, %v236
      %vm239 = vcmask 130048
      %v241 = vsel %vm239, %v228, 0
      %v244 = vsel %vm239, %v229, 0
      %246 = vmatprep.subr.mxu0 0.0
      %247 = vmatpush1.msra.mxu0 %v230
      %248 = vmatprep.subr.mxu0 0.0
      %249 = vmatpush1.msra.mxu0 %v231
      %250 = vmatprep.subr.mxu0 0.0
      %251 = vmatpush1.msra.mxu0 0.0
      %252 = vmatprep.subr.mxu0 0.0
      %253 = vmatpush1.msra.mxu0 0.0
      %254 = vmatprep.subr.mxu0 0.0
      %255 = vmatpush1.msra.mxu0 0.0
      %256 = vmatprep.subr.mxu0 0.0
      %257 = vmatpush1.msra.mxu0 0.0
      %258 = vmatprep.subr.mxu0 0.0
      %259 = vmatpush1.msra.mxu0 0.0
      %260 = vmatprep.subr.mxu0 0.0
      %261 = vmatpush1.msra.mxu0 0.0
      %262 = vmatprep.subr.mxu0 0.0
      %263 = vmatpush1.msra.mxu0 0.0
      %264 = vmatprep.subr.mxu0 0.0
      %265 = vmatpush1.msra.mxu0 0.0
      %266 = vmatprep.subr.mxu0 0.0
      %267 = vmatpush1.msra.mxu0 0.0
      %268 = vmatprep.subr.mxu0 0.0
      %269 = vmatpush1.msra.mxu0 0.0
      %270 = vmatprep.subr.mxu0 0.0
      %271 = vmatpush1.msra.mxu0 0.0
      %272 = vmatprep.subr.mxu0 0.0
      %273 = vmatpush1.msra.mxu0 0.0
      %274 = vmatprep.subr.mxu0 0.0
      %275 = vmatpush1.msra.mxu0 0.0
      %276 = vmatprep.subr.mxu0 0.0
      %277 = vmatpush1.msra.mxu0 0.0
      %278 = vmatprep.subr.mxu0 0.0
      %279 = vmatpush1.msra.mxu0 0.0
      %280 = vmatprep.subr.mxu0 0.0
      %281 = vmatpush1.msra.mxu0 0.0
      %282 = vmatprep.subr.mxu0 0.0
      %283 = vmatpush1.msra.mxu0 0.0
      %284 = vmatprep.subr.mxu0 0.0
      %285 = vmatpush1.msra.mxu0 0.0
      %286 = vmatprep.subr.mxu0 0.0
      %287 = vmatpush1.msra.mxu0 0.0
      %288 = vmatprep.subr.mxu0 0.0
      %289 = vmatpush1.msra.mxu0 0.0
      %290 = vmatprep.subr.mxu0 0.0
      %291 = vmatpush1.msra.mxu0 0.0
      %292 = vmatprep.subr.mxu0 0.0
      %293 = vmatpush1.msra.mxu0 0.0
      %294 = vmatprep.subr.mxu0 0.0
      %295 = vmatpush1.msra.mxu0 0.0
      %296 = vmatprep.subr.mxu0 0.0
      %297 = vmatpush1.msra.mxu0 0.0
      %298 = vmatprep.subr.mxu0 0.0
      %299 = vmatpush1.msra.mxu0 0.0
      %300 = vmatprep.subr.mxu0 0.0
      %301 = vmatpush1.msra.mxu0 0.0
      %302 = vmatprep.subr.mxu0 0.0
      %303 = vmatpush1.msra.mxu0 0.0
      %304 = vmatprep.subr.mxu0 0.0
      %305 = vmatpush1.msra.mxu0 0.0
      %306 = vmatprep.subr.mxu0 0.0
      %307 = vmatpush1.msra.mxu0 0.0
      %308 = vmatprep.subr.mxu0 0.0
      %309 = vmatpush1.msra.mxu0 0.0
      %310 = vmatprep.mubr.f32.mxu0 0.0
      %311 = vmatmul.mubr.f32.gmra.mrb[0].mxu0 %v241
      %v312 = vpop.f32.mrb[0].mxu0
      %v313 = vadd.f32 %v237, %v312
      %v314 = vpop.f32.mrb[0].mxu0
      %315 = vmatprep.mubr.f32.mxu0 0.0
      %316 = vmatmul.mubr.f32.gmra.mrb[0].mxu0 %v244
      %v317 = vpop.f32.mrb[0].mxu0
      %v318 = vadd.f32 %v237, %v317
      %v319 = vpop.f32.mrb[0].mxu0
      %320 = vdwg.mxu0
      %vm321 = vcmp.ge.f32.partialorder %v313, 0.0
      %vm322 = vcmp.ge.f32.partialorder %v318, 0.0
      %v323 = vmul.f32 %v313, 0.01
      %v324 = vmul.f32 %v318, 0.01
      %v325 = vsel %vm321, %v313, %v323
      %v326 = vsel %vm322, %v318, %v324
      %v327 = vld [vmem:[%s3] sm:$0xff]
      %v328 = vld [vmem:[%s3 + $0x8] sm:$0xff]
      %v329 = vld [vmem:[%s3 + $0x10] sm:$0xff]
      %v330 = vld [vmem:[%s3 + $0x18] sm:$0xff]
      %v331 = vld [vmem:[%s4] sm:$0x1]
      %v333 = vlaneseq
      %v334 = vshrl.u32 %v333, 7
      %v335 = vsub.s32 0, %v334
      %v336 = vrot.slane %v331, %v335
      %vm338 = vcmask 261120
      %v340 = vsel %vm338, %v325, 0
      %v343 = vsel %vm338, %v326, 0
      %345 = vmatprep.subr.mxu0 0.0
      %346 = vmatpush1.msra.mxu0 %v327
      %347 = vmatprep.subr.mxu0 0.0
      %348 = vmatpush1.msra.mxu0 %v328
      %349 = vmatprep.subr.mxu0 0.0
      %350 = vmatpush1.msra.mxu0 %v329
      %351 = vmatprep.subr.mxu0 0.0
      %352 = vmatpush1.msra.mxu0 %v330
      %353 = vmatprep.subr.mxu0 0.0
      %354 = vmatpush1.msra.mxu0 0.0
      %355 = vmatprep.subr.mxu0 0.0
      %356 = vmatpush1.msra.mxu0 0.0
      %357 = vmatprep.subr.mxu0 0.0
      %358 = vmatpush1.msra.mxu0 0.0
      %359 = vmatprep.subr.mxu0 0.0
      %360 = vmatpush1.msra.mxu0 0.0
      %361 = vmatprep.subr.mxu0 0.0
      %362 = vmatpush1.msra.mxu0 0.0
      %363 = vmatprep.subr.mxu0 0.0
      %364 = vmatpush1.msra.mxu0 0.0
      %365 = vmatprep.subr.mxu0 0.0
      %366 = vmatpush1.msra.mxu0 0.0
      %367 = vmatprep.subr.mxu0 0.0
      %368 = vmatpush1.msra.mxu0 0.0
      %369 = vmatprep.subr.mxu0 0.0
      %370 = vmatpush1.msra.mxu0 0.0
      %371 = vmatprep.subr.mxu0 0.0
      %372 = vmatpush1.msra.mxu0 0.0
      %373 = vmatprep.subr.mxu0 0.0
      %374 = vmatpush1.msra.mxu0 0.0
      %375 = vmatprep.subr.mxu0 0.0
      %376 = vmatpush1.msra.mxu0 0.0
      %377 = vmatprep.subr.mxu0 0.0
      %378 = vmatpush1.msra.mxu0 0.0
      %379 = vmatprep.subr.mxu0 0.0
      %380 = vmatpush1.msra.mxu0 0.0
      %381 = vmatprep.subr.mxu0 0.0
      %382 = vmatpush1.msra.mxu0 0.0
      %383 = vmatprep.subr.mxu0 0.0
      %384 = vmatpush1.msra.mxu0 0.0
      %385 = vmatprep.subr.mxu0 0.0
      %386 = vmatpush1.msra.mxu0 0.0
      %387 = vmatprep.subr.mxu0 0.0
      %388 = vmatpush1.msra.mxu0 0.0
      %389 = vmatprep.subr.mxu0 0.0
      %390 = vmatpush1.msra.mxu0 0.0
      %391 = vmatprep.subr.mxu0 0.0
      %392 = vmatpush1.msra.mxu0 0.0
      %393 = vmatprep.subr.mxu0 0.0
      %394 = vmatpush1.msra.mxu0 0.0
      %395 = vmatprep.subr.mxu0 0.0
      %396 = vmatpush1.msra.mxu0 0.0
      %397 = vmatprep.subr.mxu0 0.0
      %398 = vmatpush1.msra.mxu0 0.0
      %399 = vmatprep.subr.mxu0 0.0
      %400 = vmatpush1.msra.mxu0 0.0
      %401 = vmatprep.subr.mxu0 0.0
      %402 = vmatpush1.msra.mxu0 0.0
      %403 = vmatprep.subr.mxu0 0.0
      %404 = vmatpush1.msra.mxu0 0.0
      %405 = vmatprep.subr.mxu0 0.0
      %406 = vmatpush1.msra.mxu0 0.0
      %407 = vmatprep.subr.mxu0 0.0
      %408 = vmatpush1.msra.mxu0 0.0
      %409 = vmatprep.mubr.f32.mxu0 0.0
      %410 = vmatmul.mubr.f32.gmra.mrb[0].mxu0 %v340
      %v411 = vpop.f32.mrb[0].mxu0
      %v412 = vadd.f32 %v336, %v411
      %v413 = vpop.f32.mrb[0].mxu0
      %414 = vmatprep.mubr.f32.mxu0 0.0
      %415 = vmatmul.mubr.f32.gmra.mrb[0].mxu0 %v343
      %v416 = vpop.f32.mrb[0].mxu0
      %v417 = vadd.f32 %v336, %v416
      %v418 = vpop.f32.mrb[0].mxu0
      %419 = vdwg.mxu0
      %vm420 = vcmp.ge.f32.partialorder %v412, 0.0
      %vm421 = vcmp.ge.f32.partialorder %v417, 0.0
      %v422 = vmul.f32 %v412, 0.01
      %v423 = vmul.f32 %v417, 0.01
      %v424 = vsel %vm420, %v412, %v422
      %v425 = vsel %vm421, %v417, %v423
      %426 = vst.msk [vmem:[%s226] sm:$0xff] %vm338, %v424
      %427 = vst.msk [vmem:[%s226 + $0x8] sm:$0xff] %vm338, %v425
      %s428 = smul.u32 2, %s16
      %p429 = scmp.lt.s32.totalorder %s428, 5
      %s430 = scalar_select %p429, %s428, 5
      %s431 = smul.addr %s430, 8
      %s432 = scalar_lea.vmem %s5, %s431
      // Predicated region
      $region41: #{tpu_custom_call.1} parent=39 // pred_check
        %p433 = pneg %p144
      $region42: #{tpu_custom_call.1} parent=39 // pred_check_branch
        %435 = sbr.rel (%p433) target = $region44
      $region43: #{tpu_custom_call.1} parent=39 // pred_region
        %s436 = smul.u32 2, %s16
      $region44: #{tpu_custom_call.1} parent=39 // pred_fallthru
        _
    $region40: #{tpu_custom_call.1} parent=5 // pred_fallthru
      _
    %p437 = scmp.le.s32.totalorder 2, %s11
    // Predicated region
    $region45: #{tpu_custom_call.1} parent=5 // pred_check
      %p438 = pneg %p437
    $region46: #{tpu_custom_call.1} parent=5 // pred_check_branch
      %440 = sbr.rel (%p438) target = $region48
    $region47: #{tpu_custom_call.1} parent=5 // pred_region
      %s441 = ssub.s32 %s11, 2
      // Predicated region
      $region49: #{tpu_custom_call.1} parent=47 // pred_check
        %p442 = pneg %p150
      $region50: #{tpu_custom_call.1} parent=47 // pred_check_branch
        %444 = sbr.rel (%p442) target = $region52
      $region51: #{tpu_custom_call.1} parent=47 // pred_region
        %s445 = smul.u32 2, %s17
        %p446 = scmp.lt.s32.totalorder %s445, 5
        %s447 = scalar_select %p446, %s445, 5
        %s448 = smul.addr %s447, 8
        %s449 = scalar_lea.vmem %s5, %s448
      $region52: #{tpu_custom_call.1} parent=47 // pred_fallthru
        _
    $region48: #{tpu_custom_call.1} parent=5 // pred_fallthru
      _
  $region6: #{tpu_custom_call.1} parent=0 // loop_footer
    %s15 = sadd.s32 1, %s11
  $region7: #{tpu_custom_call.1} parent=0 // loop_footer_branch
    %10 = sbr.rel target = $region3
  $region8: #{tpu_custom_call.1} parent=0 // loop_exit
    _

</llo_original>
